<compile_context>
chip_gen: v7x
topology: tpu7x:2x2x1
jax: 0.10.0
libtpu: 0.0.40
codegen_flags: <defaults>
</compile_context>

<pallas_src>
import functools
import math

import jax
import jax.numpy as jnp
from jax.experimental import pallas as pl
from jax.experimental.pallas import tpu as pltpu


def _round_up(x, m):
    return ((x + m - 1) // m) * m


@functools.cache
def _pack_config(gate_dtype):
    """Return (packed_dtype, coarse_shift, fine_shift) such that bitcasting the
    packed integer to `gate_dtype` yields [coarse, fine] along the new minor axis."""
    gate_dtype = jnp.dtype(gate_dtype)
    if gate_dtype.itemsize == 1:
        packed_dtype = jnp.dtype(jnp.int16)
    elif gate_dtype.itemsize == 2:
        packed_dtype = jnp.dtype(jnp.int32)
    else:
        raise ValueError(f"unsupported gate dtype: {gate_dtype}")
    bits = gate_dtype.itemsize * 8
    # Probe (eagerly, once) whether XLA's narrowing bitcast puts the low or the
    # high half at index 0, so the kernel packs [coarse, fine] in exactly that
    # order.  ensure_compile_time_eval keeps this concrete even under jit.
    with jax.ensure_compile_time_eval():
        low_half_is_index0 = bool(
            jax.lax.bitcast_convert_type(jnp.ones((), packed_dtype), gate_dtype)[0] == 1
        )
    coarse_shift, fine_shift = (0, bits) if low_half_is_index0 else (bits, 0)
    return packed_dtype, coarse_shift, fine_shift


def _router_kernel(e_ref, packed_ref, *, threshold, coarse_shift, fine_shift):
    e = e_ref[...]
    # Two independent comparisons (not "1 - fine") to preserve PyTorch NaN
    # semantics: a NaN entropy routes to neither branch.
    fine = (e > threshold).astype(jnp.int32)
    coarse = (e <= threshold).astype(jnp.int32)
    packed = (coarse << coarse_shift) | (fine << fine_shift)   # pure VPU bit ops
    packed_ref[...] = packed.astype(packed_ref.dtype)


def _choose_tiling(n, max_block_elems):
    """Pick (lanes, block_rows, grid_rows) for a flat array of n elements."""
    if n % 512 == 0:
        lanes = 512
    elif n % 256 == 0:
        lanes = 256
    else:
        lanes = 128   # ragged fallback: wrapper pads the (< 128 element) tail
    rows = pl.cdiv(n, lanes)

    max_rows = max(max_block_elems // lanes, 8)
    target_blocks = pl.cdiv(rows, max_rows)
    # Mid/large inputs: use >= 2 grid steps so "parallel" semantics can shard
    # the work across both TensorCores of a v7x chip.
    if rows >= 256:
        target_blocks = max(target_blocks, 2)

    if target_blocks <= 1:
        block_rows = rows   # single full-extent block (any row count allowed)
    else:
        # Multiple-of-32 rows satisfies the f32 (8,128) / int16 (16,128) tile
        # constraints for non-full-extent blocks; Pallas masks the partial
        # last block, so no row padding is required.
        block_rows = _round_up(pl.cdiv(rows, target_blocks), 32)
    grid_rows = pl.cdiv(rows, block_rows)
    return lanes, block_rows, grid_rows


def dual_grain_fixed_entropy_router(entropy, threshold, *, gate_dtype=jnp.int8,
                                    max_block_elems=1 << 20):
    """entropy: float array (any shape) -> gate: entropy.shape + (2,), gate_dtype.

    gate[..., 0] = (entropy <= threshold), gate[..., 1] = (entropy > threshold).
    """
    shape = entropy.shape
    n = math.prod(shape)
    gate_dtype = jnp.dtype(gate_dtype)
    if n == 0:
        return jnp.zeros((*shape, 2), dtype=gate_dtype)

    # Keep f32/bf16 entropy in its native dtype (halves input traffic for
    # bf16); anything else goes through f32.
    if entropy.dtype not in (jnp.dtype(jnp.float32), jnp.dtype(jnp.bfloat16)):
        entropy = entropy.astype(jnp.float32)

    packed_dtype, coarse_shift, fine_shift = _pack_config(gate_dtype)
    lanes, block_rows, grid_rows = _choose_tiling(n, max_block_elems)
    rows = pl.cdiv(n, lanes)
    n_pad = rows * lanes

    flat = entropy.reshape(n)
    if n_pad != n:
        # Pad value is irrelevant: padded elements are sliced off below.
        flat = jnp.pad(flat, (0, n_pad - n))
    e2 = flat.reshape(rows, lanes)

    packed = pl.pallas_call(
        functools.partial(
            _router_kernel,
            threshold=float(threshold),
            coarse_shift=coarse_shift,
            fine_shift=fine_shift,
        ),
        out_shape=jax.ShapeDtypeStruct((rows, lanes), packed_dtype),
        grid=(grid_rows,),
        in_specs=[pl.BlockSpec((block_rows, lanes), lambda i: (i, 0))],
        out_specs=pl.BlockSpec((block_rows, lanes), lambda i: (i, 0)),
        compiler_params=pltpu.CompilerParams(
            dimension_semantics=("parallel",),
            # Largest block ~1M elems -> <= 4 MiB in + 4 MiB out, x2 for
            # double-buffering -> well inside v7x's 32 MiB scoped VMEM
            # (and v5e/v6e's larger VMEM).
            vmem_limit_bytes=32 * 1024 * 1024,
        ),
    )(e2)

    # Reinterpret each packed integer as a (coarse, fine) pair of gate_dtype:
    # this *is* the trailing gate axis -- no jnp.stack / relayout pass.
    gate = jax.lax.bitcast_convert_type(packed.reshape(n_pad), gate_dtype)
    if n_pad != n:
        gate = gate[:n]
    return gate.reshape(*shape, 2)


class DualGrainFixedEntropyRouter:
    """JAX/Pallas port. Thresholds are built deterministically in-script
    instead of being loaded from a JSON file."""

    def __init__(self, entropy_thresholds, fine_grain_ratio, gate_dtype=jnp.int8):
        self.entropy_thresholds = entropy_thresholds
        key = f"{int(100 - fine_grain_ratio * 100)}"
        self.fine_grain_threshold = self.entropy_thresholds[key]
        self.gate_dtype = gate_dtype

    def __call__(self, h_fine=None, h_coarse=None, entropy=None):
        return dual_grain_fixed_entropy_router(
            entropy, self.fine_grain_threshold, gate_dtype=self.gate_dtype)


if __name__ == "__main__":
    # Deterministic synthetic "entropy_thresholds" table (stand-in for the
    # JSON percentile file): threshold for percentile p is p/100 * 8.0.
    entropy_thresholds = {str(p): p / 100.0 * 8.0 for p in range(0, 101)}

    fine_grain_ratio = 0.5  # -> key '50' -> threshold 4.0
    router = DualGrainFixedEntropyRouter(entropy_thresholds, fine_grain_ratio)
    thr = router.fine_grain_threshold

    def reference_gate(e, t, dtype):
        return jnp.stack([(e <= t).astype(dtype), (e > t).astype(dtype)], axis=-1)

    key = jax.random.PRNGKey(0)

    # 1) Primary small case: lane-dense, single full-extent block, f32 input.
    B, H, W = 2, 16, 16
    entropy = jax.random.uniform(key, (B, H, W), jnp.float32, 0.0, 8.0)
    gate = jax.block_until_ready(router(entropy=entropy))
    assert gate.shape == (B, H, W, 2), gate.shape
    assert gate.dtype == jnp.int8, gate.dtype
    assert bool(jnp.all(gate == reference_gate(entropy, thr, jnp.int8)))
    assert bool(jnp.all(gate.sum(axis=-1) == 1))  # exactly one route per token

    # 2) Ragged shape (exercises the 128-lane fallback + pad/slice path).
    entropy2 = jax.random.uniform(
        jax.random.PRNGKey(1), (2, 17, 19), jnp.float32, 0.0, 8.0)
    gate2 = jax.block_until_ready(router(entropy=entropy2))
    assert gate2.shape == (2, 17, 19, 2), gate2.shape
    assert bool(jnp.all(gate2 == reference_gate(entropy2, thr, jnp.int8)))

    # 3) bf16 entropy consumed natively (no f32 upcast pass).
    entropy3 = entropy.astype(jnp.bfloat16)
    gate3 = jax.block_until_ready(router(entropy=entropy3))
    assert bool(jnp.all(gate3 == reference_gate(entropy3, thr, jnp.int8)))

    # 4) Multi-step grid + partial last block (tiny block budget forces it).
    entropy4 = jax.random.uniform(
        jax.random.PRNGKey(2), (8, 8, 83), jnp.float32, 0.0, 8.0)
    gate4 = jax.block_until_ready(
        dual_grain_fixed_entropy_router(entropy4, thr, max_block_elems=1024))
    assert gate4.shape == (8, 8, 83, 2), gate4.shape
    assert bool(jnp.all(gate4 == reference_gate(entropy4, thr, jnp.int8)))

    # 5) Wider int16 gate variant (packs into int32 instead of int16).
    gate5 = jax.block_until_ready(
        dual_grain_fixed_entropy_router(entropy, thr, gate_dtype=jnp.int16))
    assert gate5.dtype == jnp.int16, gate5.dtype
    assert bool(jnp.all(gate5 == reference_gate(entropy, thr, jnp.int16)))

    print("KERNEL_OK")
</pallas_src>

<mosaic_0001>
module attributes {stable_mosaic.version = 11 : i64} {
  func.func @_router_kernel(%arg0: i32, %arg1: memref<1x512xf32, #tpu.memory_space<vmem>>, %arg2: memref<1x512xi16, #tpu.memory_space<vmem>>) attributes {dimension_semantics = [#tpu.dimension_semantics<parallel>], iteration_bounds = array<i64: 1>, scalar_prefetch = 0 : i64, scratch_operands = 0 : i64, tpu.core_type = #tpu.core_type<tc>, window_params = [{transform_indices = @transform_0, window_bounds = array<i64: 1, 512>}, {transform_indices = @transform_1, window_bounds = array<i64: 1, 512>}]} {
    %c0 = arith.constant 0 : index
    %c0_0 = arith.constant 0 : index
    %0 = vector.load %arg1[%c0, %c0_0] : memref<1x512xf32, #tpu.memory_space<vmem>>, vector<1x512xf32>
    %cst = arith.constant 4.000000e+00 : f32
    %1 = vector.broadcast %cst : f32 to vector<1x512xf32>
    %2 = arith.cmpf ogt, %0, %1 : vector<1x512xf32>
    %3 = arith.extui %2 : vector<1x512xi1> to vector<1x512xi32>
    %cst_1 = arith.constant 4.000000e+00 : f32
    %4 = vector.broadcast %cst_1 : f32 to vector<1x512xf32>
    %5 = arith.cmpf ole, %0, %4 : vector<1x512xf32>
    %6 = arith.extui %5 : vector<1x512xi1> to vector<1x512xi32>
    %c0_i32 = arith.constant 0 : i32
    %7 = vector.broadcast %c0_i32 : i32 to vector<1x512xi32>
    %8 = arith.shli %6, %7 : vector<1x512xi32>
    %c8_i32 = arith.constant 8 : i32
    %9 = vector.broadcast %c8_i32 : i32 to vector<1x512xi32>
    %10 = arith.shli %3, %9 : vector<1x512xi32>
    %11 = arith.ori %8, %10 : vector<1x512xi32>
    %12 = arith.trunci %11 : vector<1x512xi32> to vector<1x512xi16>
    %c0_2 = arith.constant 0 : index
    %c0_3 = arith.constant 0 : index
    %13 = vector.load %arg2[%c0_2, %c0_3] : memref<1x512xi16, #tpu.memory_space<vmem>>, vector<1x512xi16>
    tpu.vector_store %arg2[%c0_2, %c0_3], %12 {strides = array<i32>} : memref<1x512xi16, #tpu.memory_space<vmem>>, vector<1x512xi16>,
    return
  }
  func.func @transform_0(%arg0: i32) -> (i32, i32) {
    %c0_i32 = arith.constant 0 : i32
    %c0_i32_0 = arith.constant 0 : i32
    return %arg0, %c0_i32 : i32, i32
  }
  func.func @transform_1(%arg0: i32) -> (i32, i32) {
    %c0_i32 = arith.constant 0 : i32
    %c0_i32_0 = arith.constant 0 : i32
    return %arg0, %c0_i32 : i32, i32
  }
}

</mosaic_0001>

<llo_original>
// kernel: tpu_custom_call.1
$region0: #{tpu_custom_call.1}
  #allocation0 [shape = 'u32[]', space=smem, size = 0x4, offset = 0x4, fixed_abs, tag = 'smem constant byte address 0x4 - core index']
  #allocation1 [shape = 'u32[144,128]{1,0:T(1,128)}', space=vmem, size = 0x12000, scoped, tag = 'internal scratch']
  %s0 = inlined_call_operand.hbm [shape: f32[1,512], index: 0, kind: input, shape index: {}]
  %s1 = inlined_call_operand.hbm [shape: s16[1,512], index: 1, kind: output, shape index: {}]
  %s2 = sld [smem:[#allocation0]]
  $region18: #{tpu_custom_call.1} parent=0
    _
  %s4 = ssub.s32 1, %s2
  %s5 = scalar_select 0, %s4, %s2
  $region1: #{tpu_custom_call.1} parent=0
    #allocation2 [shape = 'u8[2048]{0}', space=vmem, size = 0x800, scoped, tag = 'input window, operand 0, single buffered']
    #allocation3 [shape = 's32[1]{0}', space=sflag, size = 0x4, scoped, tag = 'scoped memory for tpu_custom_call.1']
    #allocation4 [shape = 's32[1]{0}', space=sflag, size = 0x4, scoped, tag = 'scoped memory for tpu_custom_call.1']
    #allocation5 [shape = 'u8[2048]{0}', space=vmem, size = 0x800, scoped, tag = 'output window, operand 0, single buffered']
    %6 = vsyncpa [#allocation3], 0
    %7 = vsyncpa [#allocation4], 0
    // Predicated region
    $region2: #{tpu_custom_call.1} parent=1 // pred_check
      _
    $region3: #{tpu_custom_call.1} parent=1 // pred_check_branch
      %9 = sbr.rel (0) target = $region5
    $region4: #{tpu_custom_call.1} parent=1 // pred_region
      %s11 = ssub.s32 64, 64
      %12 = vsyncadd [#allocation3], %s11
      %s14 = sshll.u32 [#allocation2], 4
      %s15 = int_to_ptr.vmem [resolvable:$true] %s14
      %17 = dma.hbm_to_vmem [thread:$0]  %s0, 64, %s15, [#allocation3]
    $region5: #{tpu_custom_call.1} parent=1 // pred_fallthru
      _
    // Predicated region
    $region6: #{tpu_custom_call.1} parent=1 // pred_check
      _
    $region7: #{tpu_custom_call.1} parent=1 // pred_check_branch
      %19 = sbr.rel (0) target = $region9
    $region8: #{tpu_custom_call.1} parent=1 // pred_region
      %20 = dma.done [#allocation3], 64
    $region9: #{tpu_custom_call.1} parent=1 // pred_fallthru
      _
    %v21 = vld [vmem:[#allocation2] sm:$0xf]
    %vm22 = vcmp.gt.f32.partialorder %v21, 4.0
    %v23 = vsel %vm22, 1, 0
    %vm24 = vcmp.le.f32.partialorder %v21, 4.0
    %v25 = vsel %vm24, 1, 0
    %v26 = vshll.u32 %v23, 8
    %v27 = vor.u32 %v25, %v26
    %v28 = vlaneseq
    %v29 = vshrl.u32 %v28, 7
    %v30 = vsub.s32 0, %v29
    %v31 = vrot.slane %v27, %v30
    %v32 = vlaneseq
    %v33 = vshrl.u32 %v32, 7
    %v34 = vsub.s32 1, %v33
    %v35 = vrot.slane %v27, %v34
    %v36 = vlaneseq
    %v37 = vshrl.u32 %v36, 7
    %v38 = vsub.s32 2, %v37
    %v39 = vrot.slane %v27, %v38
    %v40 = vlaneseq
    %v41 = vshrl.u32 %v40, 7
    %v42 = vsub.s32 3, %v41
    %v43 = vrot.slane %v27, %v42
    %v44 = vpack.c.b16 %v31, %v31
    %v45 = vpack.c.b16 %v35, %v35
    %v46 = vpack.c.b16 %v39, %v39
    %v47 = vpack.c.b16 %v43, %v43
    %v48 = vcombine.low %v44, %v45
    %v49 = vcombine.low %v46, %v47
    %v51 = vunpack.c.l.s4 1966171168
    %v52 = vunpack.c.0.s8 %v51
    %v53 = vlaneseq
    %v54 = vshrl.u32 %v53, 7
    %v55 = vsub.s32 %v52, %v54
    %v56 = vrot.slane %v48, %v55
    %v58 = vunpack.c.l.s4 1966171168
    %v59 = vunpack.c.0.s8 %v58
    %v60 = vlaneseq
    %v61 = vshrl.u32 %v60, 7
    %v62 = vsub.s32 %v59, %v61
    %v63 = vrot.slane %v49, %v62
    %v64 = vcombine.low %v56, %v63
    %v66 = vunpack.c.l.s4 1966171168
    %v67 = vunpack.c.0.s8 %v66
    %v68 = vlaneseq
    %v69 = vshrl.u32 %v68, 7
    %v70 = vsub.s32 %v67, %v69
    %v71 = vrot.slane %v64, %v70
    %vm72 = vcmask 1040384
    %vm73 = vsmask.f32 256
    %vm74 = vmand %vm72, %vm73
    %vm75 = vcmask 1041409
    %vm76 = vsmask.f32 1280
    %vm77 = vmand %vm75, %vm76
    %vm78 = vmor %vm77, %vm74
    %vm79 = vcmask 1042434
    %vm80 = vsmask.f32 2304
    %vm81 = vmand %vm79, %vm80
    %vm82 = vmor %vm81, %vm78
    %vm83 = vcmask 1043459
    %vm84 = vsmask.f32 3328
    %vm85 = vmand %vm83, %vm84
    %vm86 = vmor %vm85, %vm82
    %v87 = vld [vmem:[#allocation5] sm:$0xf]
    %v88 = vsel %vm86, %v71, %v87
    %89 = vst [vmem:[#allocation5] sm:$0xf] %v88
    // Predicated region
    $region10: #{tpu_custom_call.1} parent=1 // pred_check
      _
    $region11: #{tpu_custom_call.1} parent=1 // pred_check_branch
      %91 = sbr.rel (0) target = $region13
    $region12: #{tpu_custom_call.1} parent=1 // pred_region
      %s93 = ssub.s32 64, 64
      %94 = vsyncadd [#allocation4], %s93
      %s96 = sshll.u32 [#allocation5], 4
      %s97 = int_to_ptr.vmem [resolvable:$true] %s96
      %99 = dma.vmem_to_hbm [thread:$0]  %s97, 64, %s1, [#allocation4]
    $region13: #{tpu_custom_call.1} parent=1 // pred_fallthru
      _
    // Predicated region
    $region14: #{tpu_custom_call.1} parent=1 // pred_check
      _
    $region15: #{tpu_custom_call.1} parent=1 // pred_check_branch
      %101 = sbr.rel (0) target = $region17
    $region16: #{tpu_custom_call.1} parent=1 // pred_region
      %102 = dma.done [#allocation4], 64
    $region17: #{tpu_custom_call.1} parent=1 // pred_fallthru
      _
    %103 = vsyncpa [#allocation3], 1
    %104 = vsyncpa [#allocation4], 1

</llo_original>
